<compile_context>
chip_gen: v7x
topology: tpu7x:2x2x1
jax: 0.10.0
libtpu: 0.0.40
codegen_flags: <defaults>
</compile_context>

<pallas_src>
import jax
import jax.numpy as jnp
import numpy as np
from jax.experimental import pallas as pl
from jax.experimental.pallas import tpu as pltpu


# ------------------------------------------------------------------ fused kernel factory
def _make_boundary_attention_kernel(inv_hw, inv_c, approx_sigmoid):
    def sigmoid(v):
        # exp -> EUP slot; approx reciprocal -> EUP slot (frees VALU for the gating pass).
        return pl.reciprocal(1.0 + jnp.exp(-v), approx=approx_sigmoid)

    def kernel(x_ref, w1t_ref, b1_ref, w2_ref, b2_ref, ws_ref, o_ref):
        # (Bt, C, HW) block, HW lane-dense.  Compute in f32, I/O stays in caller dtype.
        xf = x_ref[...].astype(jnp.float32)

        # ---- channel attention: global avg pool -> squeeze/excite MLP -> sigmoid
        avg_c = jnp.sum(xf, axis=2, keepdims=True) * inv_hw            # (Bt, C, 1)
        hid = jnp.sum(avg_c * w1t_ref[...][None], axis=1, keepdims=True)   # (Bt, 1, Cr)
        hid = jnp.maximum(hid + b1_ref[...][None], 0.0)                 # ReLU
        catt_logit = (jnp.sum(hid * w2_ref[...][None], axis=2, keepdims=True)
                      + b2_ref[...][None])                              # (Bt, C, 1)
        catt = sigmoid(catt_logit)

        # ---- spatial attention: per-pixel channel mean / max -> 1x1 conv (no bias) -> sigmoid
        avg_s = jnp.sum(xf, axis=1, keepdims=True) * inv_c              # (Bt, 1, HW)
        max_s = jnp.max(xf, axis=1, keepdims=True)                      # (Bt, 1, HW)
        satt = sigmoid(avg_s * ws_ref[0] + max_s * ws_ref[1])           # (Bt, 1, HW)

        # ---- fused gating: out = x * channel_att * spatial_att (single elementwise pass)
        o_ref[...] = (xf * catt * satt).astype(o_ref.dtype)

    return kernel


# ------------------------------------------------------------------------- tiling helper
def _choose_batch_tile(B, per_image_bytes, target_bytes=1 << 20, min_steps=4):
    """Pick Bt so the x block is ~target_bytes while keeping >= min_steps grid steps."""
    bt = int(max(1, min(B, target_bytes // max(per_image_bytes, 1))))
    while bt > 1 and B // bt < min_steps:   # keep pipeline depth / megacore sharding
        bt -= 1
    while B % bt:                           # Bt must divide B
        bt -= 1
    return bt


# ------------------------------------------------------------------------------ wrapper
def boundary_attention(x_nchw, params, *, reduction=16, kernel_size=1,
                       approx_sigmoid=True, block_target_bytes=1 << 20):
    """Pallas implementation of BoundaryAttention.forward(x).  x: (B, C, H, W)."""
    if kernel_size != 1:
        # TODO(synk): kernel_size > 1 spatial conv needs halo taps over H/W; module default is 1.
        raise NotImplementedError("only kernel_size=1 is implemented")
    B, C, H, W = x_nchw.shape
    HW = H * W
    Cr = C // reduction

    x_flat = x_nchw.reshape(B, C, HW)                 # free reshape, no transpose, lane-dense HW
    dtype = x_flat.dtype
    bt = _choose_batch_tile(B, C * HW * dtype.itemsize, block_target_bytes)

    # Double-buffered in+out blocks + an in-kernel f32 copy + params, with slack; stays above
    # the v5e 16 MiB scoped default and far below the v7x 64 MiB physical budget.
    block_bytes = bt * C * HW * dtype.itemsize
    vmem_limit = int(min(max(8 * block_bytes + (2 << 20), 16 << 20), 64 << 20))

    kernel = _make_boundary_attention_kernel(1.0 / float(HW), 1.0 / float(C), approx_sigmoid)
    f32 = jnp.float32
    out = pl.pallas_call(
        kernel,
        out_shape=jax.ShapeDtypeStruct((B, C, HW), dtype),
        grid=(B // bt,),
        in_specs=[
            pl.BlockSpec((bt, C, HW), lambda i: (i, 0, 0)),       # x: Bt full images per step
            pl.BlockSpec((C, Cr), lambda i: (0, 0)),              # W1^T  (channel squeeze)
            pl.BlockSpec((1, Cr), lambda i: (0, 0)),              # b1
            pl.BlockSpec((C, Cr), lambda i: (0, 0)),              # W2    (channel excite)
            pl.BlockSpec((C, 1), lambda i: (0, 0)),               # b2
            pl.BlockSpec(memory_space=pltpu.MemorySpace.SMEM),    # ws: 2 scalars in SMEM
        ],
        out_specs=pl.BlockSpec((bt, C, HW), lambda i: (i, 0, 0)),
        compiler_params=pltpu.CompilerParams(
            dimension_semantics=("parallel",),                    # batch axis -> both TCs on v7x
            vmem_limit_bytes=vmem_limit),
    )(x_flat,
      jnp.transpose(params["w1"]).astype(f32),    # (C, Cr)
      params["b1"].reshape(1, Cr).astype(f32),
      params["w2"].astype(f32),                   # (C, Cr)
      params["b2"].reshape(C, 1).astype(f32),
      params["ws"].reshape(2).astype(f32))
    return out.reshape(B, C, H, W)


# ----------------------------------------------------------------------- params / reference
def init_params(key, channel, reduction=16):
    cr = channel // reduction
    k1, k2, k3, k4, k5 = jax.random.split(key, 5)
    rnd = lambda k, shape, s: s * jax.random.normal(k, shape, jnp.float32)
    return dict(
        w1=rnd(k1, (cr, channel), 0.3),   # Conv2d(C, C//r, 1).weight (squeezed)
        b1=rnd(k2, (cr,), 0.1),           # its bias
        w2=rnd(k3, (channel, cr), 0.3),   # Conv2d(C//r, C, 1).weight (squeezed)
        b2=rnd(k4, (channel,), 0.1),      # its bias
        ws=rnd(k5, (2,), 0.5),            # Conv2d(2, 1, 1, bias=False).weight -> [w_avg, w_max]
    )


def _ref_forward(x, p):
    """Pure-JAX reference matching the PyTorch module (f32)."""
    avg = jnp.mean(x, axis=(2, 3))                                          # (B, C) global avg pool
    hid = jnp.maximum(avg @ p["w1"].T + p["b1"].reshape(1, -1), 0.0)        # (B, Cr)
    catt = jax.nn.sigmoid(hid @ p["w2"].T + p["b2"].reshape(1, -1))         # (B, C)
    avg_s = jnp.mean(x, axis=1, keepdims=True)                              # (B, 1, H, W)
    max_s = jnp.max(x, axis=1, keepdims=True)                               # (B, 1, H, W)
    satt = jax.nn.sigmoid(p["ws"][0] * avg_s + p["ws"][1] * max_s)          # (B, 1, H, W)
    return x * catt[:, :, None, None] * satt


# ----------------------------------------------------------------------------------- main
if __name__ == "__main__":
    B, C, H, W = 8, 32, 16, 16        # reduction=16 -> C // reduction = 2; grid gets 4 steps
    key = jax.random.PRNGKey(0)
    kx, kp = jax.random.split(key)
    x = jax.random.normal(kx, (B, C, H, W), jnp.float32)
    params = init_params(kp, C, reduction=16)
    ref = _ref_forward(x, params)

    # Tight semantic check: f32 I/O, exact sigmoid.
    out_exact = jax.block_until_ready(
        boundary_attention(x, params, reduction=16, approx_sigmoid=False))
    np.testing.assert_allclose(np.asarray(out_exact), np.asarray(ref), rtol=1e-5, atol=1e-5)

    # Production path: bf16 I/O (half the HBM traffic) + approx (EUP) sigmoid.
    out_fast = jax.block_until_ready(
        boundary_attention(x.astype(jnp.bfloat16), params, reduction=16, approx_sigmoid=True))
    np.testing.assert_allclose(np.asarray(out_fast, np.float32), np.asarray(ref),
                               rtol=6e-2, atol=6e-2)

    print("KERNEL_OK")
</pallas_src>

<mosaic_0001>
module attributes {stable_mosaic.version = 11 : i64} {
  func.func @kernel(%arg0: i32, %arg1: memref<2x32x256xf32, #tpu.memory_space<vmem>>, %arg2: memref<32x2xf32, #tpu.memory_space<vmem>>, %arg3: memref<1x2xf32, #tpu.memory_space<vmem>>, %arg4: memref<32x2xf32, #tpu.memory_space<vmem>>, %arg5: memref<32x1xf32, #tpu.memory_space<vmem>>, %arg6: memref<2xf32, #tpu.memory_space<smem>>, %arg7: memref<2x32x256xf32, #tpu.memory_space<vmem>>) attributes {dimension_semantics = [#tpu.dimension_semantics<parallel>], iteration_bounds = array<i64: 4>, scalar_prefetch = 0 : i64, scratch_operands = 0 : i64, tpu.core_type = #tpu.core_type<tc>, window_params = [{transform_indices = @transform_0, window_bounds = array<i64: 2, 32, 256>}, {pipeline_mode = #tpu.pipeline_mode<synchronous>, transform_indices = @transform_1, window_bounds = array<i64: 32, 2>}, {pipeline_mode = #tpu.pipeline_mode<synchronous>, transform_indices = @transform_2, window_bounds = array<i64: 1, 2>}, {pipeline_mode = #tpu.pipeline_mode<synchronous>, transform_indices = @transform_3, window_bounds = array<i64: 32, 2>}, {pipeline_mode = #tpu.pipeline_mode<synchronous>, transform_indices = @transform_4, window_bounds = array<i64: 32, 1>}, {transform_indices = @transform_5, window_bounds = array<i64: 2>}, {transform_indices = @transform_6, window_bounds = array<i64: 2, 32, 256>}]} {
    %c0 = arith.constant 0 : index
    %c0_0 = arith.constant 0 : index
    %c0_1 = arith.constant 0 : index
    %0 = vector.load %arg1[%c0, %c0_0, %c0_1] : memref<2x32x256xf32, #tpu.memory_space<vmem>>, vector<2x32x256xf32>
    %cst = arith.constant dense<0.000000e+00> : vector<2x32xf32>
    %1 = vector.multi_reduction <add>, %0, %cst [2] : vector<2x32x256xf32> to vector<2x32xf32>
    %2 = vector.shape_cast %1 : vector<2x32xf32> to vector<2x32x1xf32>
    %cst_2 = arith.constant 3.906250e-03 : f32
    %3 = vector.broadcast %cst_2 : f32 to vector<2x32x1xf32>
    %4 = arith.mulf %2, %3 : vector<2x32x1xf32>
    %c0_3 = arith.constant 0 : index
    %c0_4 = arith.constant 0 : index
    %5 = vector.load %arg2[%c0_3, %c0_4] : memref<32x2xf32, #tpu.memory_space<vmem>>, vector<32x2xf32>
    %6 = vector.shape_cast %5 : vector<32x2xf32> to vector<1x32x2xf32>
    %7 = vector.broadcast %4 : vector<2x32x1xf32> to vector<2x32x2xf32>
    %8 = vector.broadcast %6 : vector<1x32x2xf32> to vector<2x32x2xf32>
    %9 = arith.mulf %7, %8 : vector<2x32x2xf32>
    %cst_5 = arith.constant dense<0.000000e+00> : vector<2x2xf32>
    %10 = vector.multi_reduction <add>, %9, %cst_5 [1] : vector<2x32x2xf32> to vector<2x2xf32>
    %11 = vector.shape_cast %10 : vector<2x2xf32> to vector<2x1x2xf32>
    %c0_6 = arith.constant 0 : index
    %c0_7 = arith.constant 0 : index
    %12 = vector.load %arg3[%c0_6, %c0_7] : memref<1x2xf32, #tpu.memory_space<vmem>>, vector<1x2xf32>
    %13 = vector.shape_cast %12 : vector<1x2xf32> to vector<1x1x2xf32>
    %14 = vector.broadcast %13 : vector<1x1x2xf32> to vector<2x1x2xf32>
    %15 = arith.addf %11, %14 : vector<2x1x2xf32>
    %cst_8 = arith.constant 0.000000e+00 : f32
    %16 = vector.broadcast %cst_8 : f32 to vector<2x1x2xf32>
    %17 = arith.maximumf %15, %16 : vector<2x1x2xf32>
    %c0_9 = arith.constant 0 : index
    %c0_10 = arith.constant 0 : index
    %18 = vector.load %arg4[%c0_9, %c0_10] : memref<32x2xf32, #tpu.memory_space<vmem>>, vector<32x2xf32>
    %19 = vector.shape_cast %18 : vector<32x2xf32> to vector<1x32x2xf32>
    %20 = vector.broadcast %17 : vector<2x1x2xf32> to vector<2x32x2xf32>
    %21 = vector.broadcast %19 : vector<1x32x2xf32> to vector<2x32x2xf32>
    %22 = arith.mulf %20, %21 : vector<2x32x2xf32>
    %cst_11 = arith.constant dense<0.000000e+00> : vector<2x32xf32>
    %23 = vector.multi_reduction <add>, %22, %cst_11 [2] : vector<2x32x2xf32> to vector<2x32xf32>
    %24 = vector.shape_cast %23 : vector<2x32xf32> to vector<2x32x1xf32>
    %c0_12 = arith.constant 0 : index
    %c0_13 = arith.constant 0 : index
    %25 = vector.load %arg5[%c0_12, %c0_13] : memref<32x1xf32, #tpu.memory_space<vmem>>, vector<32x1xf32>
    %26 = vector.shape_cast %25 : vector<32x1xf32> to vector<1x32x1xf32>
    %27 = vector.broadcast %26 : vector<1x32x1xf32> to vector<2x32x1xf32>
    %28 = arith.addf %24, %27 : vector<2x32x1xf32>
    %cst_14 = arith.constant 0.000000e+00 : f32
    %29 = vector.broadcast %cst_14 : f32 to vector<2x32x1xf32>
    %30 = arith.subf %29, %28 : vector<2x32x1xf32>
    %31 = math.exp %30 : vector<2x32x1xf32>
    %cst_15 = arith.constant 1.000000e+00 : f32
    %32 = vector.broadcast %cst_15 : f32 to vector<2x32x1xf32>
    %33 = arith.addf %32, %31 : vector<2x32x1xf32>
    %34 = tpu.reciprocal %33 : vector<2x32x1xf32> -> vector<2x32x1xf32>
    %cst_16 = arith.constant dense<0.000000e+00> : vector<2x256xf32>
    %35 = vector.multi_reduction <add>, %0, %cst_16 [1] : vector<2x32x256xf32> to vector<2x256xf32>
    %36 = vector.shape_cast %35 : vector<2x256xf32> to vector<2x1x256xf32>
    %cst_17 = arith.constant 3.125000e-02 : f32
    %37 = vector.broadcast %cst_17 : f32 to vector<2x1x256xf32>
    %38 = arith.mulf %36, %37 : vector<2x1x256xf32>
    %cst_18 = arith.constant dense<0xFF800000> : vector<2x256xf32>
    %39 = vector.multi_reduction <maximumf>, %0, %cst_18 [1] : vector<2x32x256xf32> to vector<2x256xf32>
    %40 = vector.shape_cast %39 : vector<2x256xf32> to vector<2x1x256xf32>
    %c0_19 = arith.constant 0 : index
    %41 = memref.load %arg6[%c0_19] : memref<2xf32, #tpu.memory_space<smem>>
    %42 = vector.broadcast %41 : f32 to vector<2x1x256xf32>
    %43 = arith.mulf %38, %42 : vector<2x1x256xf32>
    %c1 = arith.constant 1 : index
    %44 = memref.load %arg6[%c1] : memref<2xf32, #tpu.memory_space<smem>>
    %45 = vector.broadcast %44 : f32 to vector<2x1x256xf32>
    %46 = arith.mulf %40, %45 : vector<2x1x256xf32>
    %47 = arith.addf %43, %46 : vector<2x1x256xf32>
    %cst_20 = arith.constant 0.000000e+00 : f32
    %48 = vector.broadcast %cst_20 : f32 to vector<2x1x256xf32>
    %49 = arith.subf %48, %47 : vector<2x1x256xf32>
    %50 = math.exp %49 : vector<2x1x256xf32>
    %cst_21 = arith.constant 1.000000e+00 : f32
    %51 = vector.broadcast %cst_21 : f32 to vector<2x1x256xf32>
    %52 = arith.addf %51, %50 : vector<2x1x256xf32>
    %53 = tpu.reciprocal %52 : vector<2x1x256xf32> -> vector<2x1x256xf32>
    %54 = vector.broadcast %34 : vector<2x32x1xf32> to vector<2x32x256xf32>
    %55 = arith.mulf %0, %54 : vector<2x32x256xf32>
    %56 = vector.broadcast %53 : vector<2x1x256xf32> to vector<2x32x256xf32>
    %57 = arith.mulf %55, %56 : vector<2x32x256xf32>
    %c0_22 = arith.constant 0 : index
    %c0_23 = arith.constant 0 : index
    %c0_24 = arith.constant 0 : index
    %58 = vector.load %arg7[%c0_22, %c0_23, %c0_24] : memref<2x32x256xf32, #tpu.memory_space<vmem>>, vector<2x32x256xf32>
    tpu.vector_store %arg7[%c0_22, %c0_23, %c0_24], %57 {strides = array<i32>} : memref<2x32x256xf32, #tpu.memory_space<vmem>>, vector<2x32x256xf32>,
    return
  }
  func.func @transform_0(%arg0: i32) -> (i32, i32, i32) {
    %c0_i32 = arith.constant 0 : i32
    %c0_i32_0 = arith.constant 0 : i32
    %c0_i32_1 = arith.constant 0 : i32
    return %arg0, %c0_i32, %c0_i32_0 : i32, i32, i32
  }
  func.func @transform_1(%arg0: i32) -> (i32, i32) {
    %c0_i32 = arith.constant 0 : i32
    %c0_i32_0 = arith.constant 0 : i32
    %c0_i32_1 = arith.constant 0 : i32
    return %c0_i32, %c0_i32_0 : i32, i32
  }
  func.func @transform_2(%arg0: i32) -> (i32, i32) {
    %c0_i32 = arith.constant 0 : i32
    %c0_i32_0 = arith.constant 0 : i32
    %c0_i32_1 = arith.constant 0 : i32
    return %c0_i32, %c0_i32_0 : i32, i32
  }
  func.func @transform_3(%arg0: i32) -> (i32, i32) {
    %c0_i32 = arith.constant 0 : i32
    %c0_i32_0 = arith.constant 0 : i32
    %c0_i32_1 = arith.constant 0 : i32
    return %c0_i32, %c0_i32_0 : i32, i32
  }
  func.func @transform_4(%arg0: i32) -> (i32, i32) {
    %c0_i32 = arith.constant 0 : i32
    %c0_i32_0 = arith.constant 0 : i32
    %c0_i32_1 = arith.constant 0 : i32
    return %c0_i32, %c0_i32_0 : i32, i32
  }
  func.func @transform_5(%arg0: i32) -> i32 {
    %c0_i32 = arith.constant 0 : i32
    %c0_i32_0 = arith.constant 0 : i32
    return %c0_i32 : i32
  }
  func.func @transform_6(%arg0: i32) -> (i32, i32, i32) {
    %c0_i32 = arith.constant 0 : i32
    %c0_i32_0 = arith.constant 0 : i32
    %c0_i32_1 = arith.constant 0 : i32
    return %arg0, %c0_i32, %c0_i32_0 : i32, i32, i32
  }
}

</mosaic_0001>

<llo_original>
// kernel: tpu_custom_call.1
$region0: #{tpu_custom_call.1}
  #allocation0 [shape = 'u32[]', space=smem, size = 0x4, offset = 0x4, fixed_abs, tag = 'smem constant byte address 0x4 - core index']
  #allocation1 [shape = 'u32[144,128]{1,0:T(1,128)}', space=vmem, size = 0x12000, scoped, tag = 'internal scratch']
  %s0 = inlined_call_operand.hbm [shape: f32[8,32,256], index: 0, kind: input, shape index: {}]
  %s1 = inlined_call_operand.vmem [shape: f32[32,2], index: 1, kind: input, shape index: {}]
  %s2 = inlined_call_operand.vmem [shape: f32[1,2], index: 2, kind: input, shape index: {}]
  %s3 = inlined_call_operand.vmem [shape: f32[32,2], index: 3, kind: input, shape index: {}]
  %s4 = inlined_call_operand.vmem [shape: f32[32,1], index: 4, kind: input, shape index: {}]
  %s5 = inlined_call_operand.vmem [shape: f32[2], index: 5, kind: input, shape index: {}]
  %s6 = inlined_call_operand.hbm [shape: f32[8,32,256], index: 6, kind: output, shape index: {}]
  %s7 = sld [smem:[#allocation0]]
  $region65: #{tpu_custom_call.1} parent=0
    _
  %s9 = ssub.s32 1, %s7
  %s10 = scalar_select 0, %s9, %s7
  $region1: #{tpu_custom_call.1} parent=0
    #allocation2 [shape = 'u8[131072]{0}', space=vmem, size = 0x20000, scoped, tag = 'input window, operand 0']
    #allocation3 [shape = 's32[2]{0}', space=sflag, size = 0x8, scoped, tag = 'scoped memory for tpu_custom_call.1']
    #allocation4 [shape = 's32[2]{0}', space=sflag, size = 0x8, scoped, tag = 'scoped memory for tpu_custom_call.1']
    #allocation5 [shape = 's32[2]{0}', space=sflag, size = 0x8, scoped, tag = 'scoped memory for tpu_custom_call.1']
    #allocation6 [shape = 'u8[512]{0}', space=smem, size = 0x200, scoped, tag = 'input window, operand 5, single buffered']
    #allocation7 [shape = 'u8[131072]{0}', space=vmem, size = 0x20000, scoped, tag = 'output window, operand 0']
    %11 = vsyncpa [#allocation3], 0
    %s12 = scalar_lea.sflag [#allocation3], 1
    %13 = vsyncpa %s12, 0
    %14 = vsyncpa [#allocation5], 0
    %15 = vsyncpa [#allocation4], 0
    %s16 = scalar_lea.sflag [#allocation4], 1
    %17 = vsyncpa %s16, 0
    loop: start=0, step=1, limit=6
    $region2: #{tpu_custom_call.1} parent=1 // loop_pre_header
      _
    $region3: #{tpu_custom_call.1} parent=1 // loop_header
      %s19 = sphi 0, %s23
      %p20 = scmp.ge.s32.totalorder %s19, 6
      %s29 = sphi 0, %s31
      %s32 = sphi 0, %s29
      %s33 = sphi 0, %s32
      %s49 = sphi 0, %s33
      %s53 = sphi 0, %s53
      %s55 = sphi 0, %s53
      %s56 = sphi 0, %s55
      %s70 = sphi 0, %s56
      %s74 = sphi 0, %s74
      %s76 = sphi 0, %s74
      %s77 = sphi 0, %s76
      %s91 = sphi 0, %s77
      %s95 = sphi 0, %s95
      %s97 = sphi 0, %s95
      %s98 = sphi 0, %s97
      %s112 = sphi 0, %s98
      %s116 = sphi 0, %s116
      %s118 = sphi 0, %s116
      %s119 = sphi 0, %s118
      %s133 = sphi 0, %s119
      %s137 = sphi 0, %s137
      %s139 = sphi 0, %s137
      %s140 = sphi 0, %s139
      %s154 = sphi 0, %s140
      %s160 = sphi 0, %s162
      %s163 = sphi 0, %s160
      %s164 = sphi 0, %s163
      %s180 = sphi 0, %s164
    $region4: #{tpu_custom_call.1} parent=1 // loop_header_branch
      %22 = sbr.rel (%p20) target = $region8
    $region5: #{tpu_custom_call.1} parent=1 // loop_body
      %s24 = ssub.s32 %s19, 1
      %s25 = ssub.s32 %s19, 2
      %s26 = sadd.s32 %s19, 1
      %s27 = ssub.s32 %s19, %s26
      %p28 = scmp.eq.s32.totalorder %s27, 0
      %s30 = sadd.s32 %s29, 1
      %s31 = scalar_select %p28, %s29, %s30
      %p34 = pneg %p28
      %p35 = scmp.eq.s32.totalorder %s19, 3
      %p36 = por %p34, %p35
      %p37 = scmp.ne.s32.totalorder %s29, %s32
      %p38 = scmp.eq.s32.totalorder %s19, 0
      %p39 = por %p37, %p38
      %p40 = scmp.ne.s32.totalorder %s29, %s32
      %p41 = scmp.eq.s32.totalorder %s24, 3
      %p42 = por %p40, %p41
      %p43 = scmp.ne.s32.totalorder %s32, %s33
      %p44 = scmp.eq.s32.totalorder %s24, 0
      %p45 = por %p43, %p44
      %p46 = scmp.ne.s32.totalorder %s32, %s33
      %p47 = scmp.eq.s32.totalorder %s25, 3
      %p48 = por %p46, %p47
      %p50 = scmp.ne.s32.totalorder %s33, %s49
      %p51 = scmp.eq.s32.totalorder %s25, 0
      %p52 = por %p50, %p51
      %s54 = sadd.s32 %s53, 1
      %p57 = scmp.eq.s32.totalorder %s19, 3
      %p58 = scmp.ne.s32.totalorder %s53, %s55
      %p59 = scmp.eq.s32.totalorder %s19, 0
      %p60 = por %p58, %p59
      %p61 = scmp.ne.s32.totalorder %s53, %s55
      %p62 = scmp.eq.s32.totalorder %s24, 3
      %p63 = por %p61, %p62
      %p64 = scmp.ne.s32.totalorder %s55, %s56
      %p65 = scmp.eq.s32.totalorder %s24, 0
      %p66 = por %p64, %p65
      %p67 = scmp.ne.s32.totalorder %s55, %s56
      %p68 = scmp.eq.s32.totalorder %s25, 3
      %p69 = por %p67, %p68
      %p71 = scmp.ne.s32.totalorder %s56, %s70
      %p72 = scmp.eq.s32.totalorder %s25, 0
      %p73 = por %p71, %p72
      %s75 = sadd.s32 %s74, 1
      %p78 = scmp.eq.s32.totalorder %s19, 3
      %p79 = scmp.ne.s32.totalorder %s74, %s76
      %p80 = scmp.eq.s32.totalorder %s19, 0
      %p81 = por %p79, %p80
      %p82 = scmp.ne.s32.totalorder %s74, %s76
      %p83 = scmp.eq.s32.totalorder %s24, 3
      %p84 = por %p82, %p83
      %p85 = scmp.ne.s32.totalorder %s76, %s77
      %p86 = scmp.eq.s32.totalorder %s24, 0
      %p87 = por %p85, %p86
      %p88 = scmp.ne.s32.totalorder %s76, %s77
      %p89 = scmp.eq.s32.totalorder %s25, 3
      %p90 = por %p88, %p89
      %p92 = scmp.ne.s32.totalorder %s77, %s91
      %p93 = scmp.eq.s32.totalorder %s25, 0
      %p94 = por %p92, %p93
      %s96 = sadd.s32 %s95, 1
      %p99 = scmp.eq.s32.totalorder %s19, 3
      %p100 = scmp.ne.s32.totalorder %s95, %s97
      %p101 = scmp.eq.s32.totalorder %s19, 0
      %p102 = por %p100, %p101
      %p103 = scmp.ne.s32.totalorder %s95, %s97
      %p104 = scmp.eq.s32.totalorder %s24, 3
      %p105 = por %p103, %p104
      %p106 = scmp.ne.s32.totalorder %s97, %s98
      %p107 = scmp.eq.s32.totalorder %s24, 0
      %p108 = por %p106, %p107
      %p109 = scmp.ne.s32.totalorder %s97, %s98
      %p110 = scmp.eq.s32.totalorder %s25, 3
      %p111 = por %p109, %p110
      %p113 = scmp.ne.s32.totalorder %s98, %s112
      %p114 = scmp.eq.s32.totalorder %s25, 0
      %p115 = por %p113, %p114
      %s117 = sadd.s32 %s116, 1
      %p120 = scmp.eq.s32.totalorder %s19, 3
      %p121 = scmp.ne.s32.totalorder %s116, %s118
      %p122 = scmp.eq.s32.totalorder %s19, 0
      %p123 = por %p121, %p122
      %p124 = scmp.ne.s32.totalorder %s116, %s118
      %p125 = scmp.eq.s32.totalorder %s24, 3
      %p126 = por %p124, %p125
      %p127 = scmp.ne.s32.totalorder %s118, %s119
      %p128 = scmp.eq.s32.totalorder %s24, 0
      %p129 = por %p127, %p128
      %p130 = scmp.ne.s32.totalorder %s118, %s119
      %p131 = scmp.eq.s32.totalorder %s25, 3
      %p132 = por %p130, %p131
      %p134 = scmp.ne.s32.totalorder %s119, %s133
      %p135 = scmp.eq.s32.totalorder %s25, 0
      %p136 = por %p134, %p135
      %s138 = sadd.s32 %s137, 1
      %p141 = scmp.eq.s32.totalorder %s19, 3
      %p142 = scmp.ne.s32.totalorder %s137, %s139
      %p143 = scmp.eq.s32.totalorder %s19, 0
      %p144 = por %p142, %p143
      %p145 = scmp.ne.s32.totalorder %s137, %s139
      %p146 = scmp.eq.s32.totalorder %s24, 3
      %p147 = por %p145, %p146
      %p148 = scmp.ne.s32.totalorder %s139, %s140
      %p149 = scmp.eq.s32.totalorder %s24, 0
      %p150 = por %p148, %p149
      %p151 = scmp.ne.s32.totalorder %s139, %s140
      %p152 = scmp.eq.s32.totalorder %s25, 3
      %p153 = por %p151, %p152
      %p155 = scmp.ne.s32.totalorder %s140, %s154
      %p156 = scmp.eq.s32.totalorder %s25, 0
      %p157 = por %p155, %p156
      %s158 = ssub.s32 %s19, %s26
      %p159 = scmp.eq.s32.totalorder %s158, 0
      %s161 = sadd.s32 %s160, 1
      %s162 = scalar_select %p159, %s160, %s161
      %p165 = pneg %p159
      %p166 = scmp.eq.s32.totalorder %s19, 3
      %p167 = por %p165, %p166
      %p168 = scmp.ne.s32.totalorder %s160, %s163
      %p169 = scmp.eq.s32.totalorder %s19, 0
      %p170 = por %p168, %p169
      %p171 = scmp.ne.s32.totalorder %s160, %s163
      %p172 = scmp.eq.s32.totalorder %s24, 3
      %p173 = por %p171, %p172
      %p174 = scmp.ne.s32.totalorder %s163, %s164
      %p175 = scmp.eq.s32.totalorder %s24, 0
      %p176 = por %p174, %p175
      %p177 = scmp.ne.s32.totalorder %s163, %s164
      %p178 = scmp.eq.s32.totalorder %s25, 3
      %p179 = por %p177, %p178
      %p181 = scmp.ne.s32.totalorder %s164, %s180
      %p182 = scmp.eq.s32.totalorder %s25, 0
      %p183 = por %p181, %p182
      %p184 = scmp.le.s32.totalorder 1, %s19
      %p185 = scmp.lt.s32.totalorder %s19, 5
      %p186 = pnand %p184, %p185
      %p187 = pneg %p186
      // Predicated region
      $region9: #{tpu_custom_call.1} parent=5 // pred_check
        _
      $region10: #{tpu_custom_call.1} parent=5 // pred_check_branch
        %189 = sbr.rel (%p186) target = $region12
      $region11: #{tpu_custom_call.1} parent=5 // pred_region
        %s190 = ssub.s32 %s19, 1
        // Predicated region
        $region13: #{tpu_custom_call.1} parent=11 // pred_check
          %p191 = pneg %p66
        $region14: #{tpu_custom_call.1} parent=11 // pred_check_branch
          %193 = sbr.rel (%p191) target = $region16
        $region15: #{tpu_custom_call.1} parent=11 // pred_region
          _
        $region16: #{tpu_custom_call.1} parent=11 // pred_fallthru
          _
        // Predicated region
        $region17: #{tpu_custom_call.1} parent=11 // pred_check
          %p194 = pneg %p87
        $region18: #{tpu_custom_call.1} parent=11 // pred_check_branch
          %196 = sbr.rel (%p194) target = $region20
        $region19: #{tpu_custom_call.1} parent=11 // pred_region
          _
        $region20: #{tpu_custom_call.1} parent=11 // pred_fallthru
          _
        // Predicated region
        $region21: #{tpu_custom_call.1} parent=11 // pred_check
          %p197 = pneg %p108
        $region22: #{tpu_custom_call.1} parent=11 // pred_check_branch
          %199 = sbr.rel (%p197) target = $region24
        $region23: #{tpu_custom_call.1} parent=11 // pred_region
          _
        $region24: #{tpu_custom_call.1} parent=11 // pred_fallthru
          _
        // Predicated region
        $region25: #{tpu_custom_call.1} parent=11 // pred_check
          %p200 = pneg %p129
        $region26: #{tpu_custom_call.1} parent=11 // pred_check_branch
          %202 = sbr.rel (%p200) target = $region28
        $region27: #{tpu_custom_call.1} parent=11 // pred_region
          _
        $region28: #{tpu_custom_call.1} parent=11 // pred_fallthru
          _
        // Predicated region
        $region29: #{tpu_custom_call.1} parent=11 // pred_check
          %p203 = pneg %p150
        $region30: #{tpu_custom_call.1} parent=11 // pred_check_branch
          %205 = sbr.rel (%p203) target = $region32
        $region31: #{tpu_custom_call.1} parent=11 // pred_region
          %s207 = ssub.s32 16, 16
          %208 = vsyncadd [#allocation5], %s207
          %s210 = sshll.u32 %s5, 4
          %s211 = int_to_ptr.vmem [resolvable:$true] %s210
          %213 = dma.vmem_to_smem %s211, 16, [#allocation6], [#allocation5]
        $region32: #{tpu_custom_call.1} parent=11 // pred_fallthru
          _
      $region12: #{tpu_custom_call.1} parent=5 // pred_fallthru
        _
      %p214 = scmp.lt.s32.totalorder %s19, 4
      // Predicated region
      $region33: #{tpu_custom_call.1} parent=5 // pred_check
        %p215 = pneg %p214
      $region34: #{tpu_custom_call.1} parent=5 // pred_check_branch
        %217 = sbr.rel (%p215) target = $region36
      $region35: #{tpu_custom_call.1} parent=5 // pred_region
        // Predicated region
        $region37: #{tpu_custom_call.1} parent=35 // pred_check
          %p218 = pneg %p39
        $region38: #{tpu_custom_call.1} parent=35 // pred_check_branch
          %220 = sbr.rel (%p218) target = $region40
        $region39: #{tpu_custom_call.1} parent=35 // pred_region
          %s221 = sand.u32 %s29, 1
          %s222 = scalar_lea.sflag [#allocation3], %s221
          %s223 = sand.u32 %s29, 1
          %s224 = smul.addr %s223, 128
          %s225 = scalar_lea.vmem [#allocation2], %s224
          %s226 = smul.u32 2, %s19
          %s228 = ssub.s32 2048, 2048
          %229 = vsyncadd %s222, %s228
          %s230 = smul.addr %s226, 8
          %s231 = smul.addr %s230, 128
          %s232 = scalar_lea.hbm %s0, %s231
          %s233 = sshll.u32 %s225, 4
          %s234 = int_to_ptr.vmem [resolvable:$true] %s233
          %239 = dma.hbm_to_vmem [thread:$0]  %s232, 2048, %s234, %s222, 256, 256, 16
        $region40: #{tpu_custom_call.1} parent=35 // pred_fallthru
          _
      $region36: #{tpu_custom_call.1} parent=5 // pred_fallthru
        _
      %p240 = scmp.le.s32.totalorder 1, %s19
      %p241 = scmp.lt.s32.totalorder %s19, 5
      %p242 = pnand %p240, %p241
      %p243 = pneg %p242
      // Predicated region
      $region41: #{tpu_custom_call.1} parent=5 // pred_check
        _
      $region42: #{tpu_custom_call.1} parent=5 // pred_check_branch
        %245 = sbr.rel (%p242) target = $region44
      $region43: #{tpu_custom_call.1} parent=5 // pred_region
        %s246 = ssub.s32 %s19, 1
        %s247 = sand.u32 %s32, 1
        %s248 = scalar_lea.sflag [#allocation3], %s247
        %s249 = sand.u32 %s32, 1
        %s250 = smul.addr %s249, 128
        %s251 = scalar_lea.vmem [#allocation2], %s250
        // Predicated region
        $region45: #{tpu_custom_call.1} parent=43 // pred_check
          %p252 = pneg %p45
        $region46: #{tpu_custom_call.1} parent=43 // pred_check_branch
          %254 = sbr.rel (%p252) target = $region48
        $region47: #{tpu_custom_call.1} parent=43 // pred_region
          %255 = dma.done %s248, 2048
        $region48: #{tpu_custom_call.1} parent=43 // pred_fallthru
          _
        // Predicated region
        $region49: #{tpu_custom_call.1} parent=43 // pred_check
          %p256 = pneg %p150
        $region50: #{tpu_custom_call.1} parent=43 // pred_check_branch
          %258 = sbr.rel (%p256) target = $region52
        $region51: #{tpu_custom_call.1} parent=43 // pred_region
          %259 = dma.done [#allocation5], 16
        $region52: #{tpu_custom_call.1} parent=43 // pred_fallthru
          _
        %260 = sfence
        %s261 = sand.u32 %s32, 1
        %s262 = scalar_lea.sflag [#allocation3], %s261
        %s263 = sand.u32 %s32, 1
        %s264 = smul.addr %s263, 128
        %s265 = scalar_lea.vmem [#allocation2], %s264
        %p266 = pneg %p45
        %p267 = pneg %p42
        %p268 = pneg %p66
        %p269 = pneg %p63
        %p270 = pneg %p87
        %p271 = pneg %p84
        %p272 = pneg %p108
        %p273 = pneg %p105
        %p274 = pneg %p129
        %p275 = pneg %p126
        %p276 = pneg %p150
        %p277 = pneg %p147
        %p278 = pneg %p176
        %p279 = pneg %p173
        %s280 = sand.u32 %s163, 1
        %s281 = scalar_lea.sflag [#allocation4], %s280
        %s282 = sand.u32 %s163, 1
        %s283 = smul.addr %s282, 128
        %s284 = scalar_lea.vmem [#allocation7], %s283
        %s285 = smul.u32 2, %s24
        %s286 = smul.u32 2, %s24
        %v287 = vld [vmem:[%s251] sm:$0xff]
        %v288 = vld [vmem:[%s251 + $0x8] sm:$0xff]
        %v289 = vld [vmem:[%s251 + $0x10] sm:$0xff]
        %v290 = vld [vmem:[%s251 + $0x18] sm:$0xff]
        %v291 = vld [vmem:[%s251 + $0x20] sm:$0xff]
        %v292 = vld [vmem:[%s251 + $0x28] sm:$0xff]
        %v293 = vld [vmem:[%s251 + $0x30] sm:$0xff]
        %v294 = vld [vmem:[%s251 + $0x38] sm:$0xff]
        %v295 = vld [vmem:[%s251 + $0x40] sm:$0xff]
        %v296 = vld [vmem:[%s251 + $0x48] sm:$0xff]
        %v297 = vld [vmem:[%s251 + $0x50] sm:$0xff]
        %v298 = vld [vmem:[%s251 + $0x58] sm:$0xff]
        %v299 = vld [vmem:[%s251 + $0x60] sm:$0xff]
        %v300 = vld [vmem:[%s251 + $0x68] sm:$0xff]
        %v301 = vld [vmem:[%s251 + $0x70] sm:$0xff]
        %v302 = vld [vmem:[%s251 + $0x78] sm:$0xff]
        %v303 = vadd.f32 %v287, %v288
        %304 = vadd.xlane.f32.xlu0 %v303
        %v305 = vpop.xlane.xlu0 %304
        %v306 = vadd.f32 %v289, %v290
        %307 = vadd.xlane.f32.xlu0 %v306
        %v308 = vpop.xlane.xlu0 %307
        %v309 = vadd.f32 %v291, %v292
        %310 = vadd.xlane.f32.xlu0 %v309
        %v311 = vpop.xlane.xlu0 %310
        %v312 = vadd.f32 %v293, %v294
        %313 = vadd.xlane.f32.xlu0 %v312
        %v314 = vpop.xlane.xlu0 %313
        %v315 = vadd.f32 %v295, %v296
        %316 = vadd.xlane.f32.xlu0 %v315
        %v317 = vpop.xlane.xlu0 %316
        %v318 = vadd.f32 %v297, %v298
        %319 = vadd.xlane.f32.xlu0 %v318
        %v320 = vpop.xlane.xlu0 %319
        %v321 = vadd.f32 %v299, %v300
        %322 = vadd.xlane.f32.xlu0 %v321
        %v323 = vpop.xlane.xlu0 %322
        %v324 = vadd.f32 %v301, %v302
        %325 = vadd.xlane.f32.xlu0 %v324
        %v326 = vpop.xlane.xlu0 %325
        %v327 = vmul.f32 %v305, 0.00390625
        %v328 = vmul.f32 %v308, 0.00390625
        %v329 = vmul.f32 %v311, 0.00390625
        %v330 = vmul.f32 %v314, 0.00390625
        %v331 = vmul.f32 %v317, 0.00390625
        %v332 = vmul.f32 %v320, 0.00390625
        %v333 = vmul.f32 %v323, 0.00390625
        %v334 = vmul.f32 %v326, 0.00390625
        %v335 = vld [vmem:[%s1] sm:$0xff]
        %v336 = vld [vmem:[%s1 + $0x8] sm:$0xff]
        %v337 = vld [vmem:[%s1 + $0x10] sm:$0xff]
        %v338 = vld [vmem:[%s1 + $0x18] sm:$0xff]
        %v339 = vmul.f32 %v327, %v335
        %v340 = vmul.f32 %v328, %v336
        %v341 = vmul.f32 %v329, %v337
        %v342 = vmul.f32 %v330, %v338
        %v343 = vmul.f32 %v331, %v335
        %v344 = vmul.f32 %v332, %v336
        %v345 = vmul.f32 %v333, %v337
        %v346 = vmul.f32 %v334, %v338
        %vm347 = vcmask 15360
        %v348 = vsel %vm347, %v339, 0.0
        %v349 = vsel %vm347, %v340, 0.0
        %v350 = vadd.f32 %v348, %v349
        %v351 = vsel %vm347, %v341, 0.0
        %v352 = vadd.f32 %v350, %v351
        %v353 = vsel %vm347, %v342, 0.0
        %v354 = vadd.f32 %v352, %v353
        %v355 = vrot.slane %v354, 4
        %v356 = vadd.f32 %v354, %v355
        %v357 = vrot.slane %v356, 2
        %v358 = vadd.f32 %v356, %v357
        %v359 = vrot.slane %v358, 1
        %v360 = vadd.f32 %v358, %v359
        %v361 = vsel %vm347, %v343, 0.0
        %v362 = vsel %vm347, %v344, 0.0
        %v363 = vadd.f32 %v361, %v362
        %v364 = vsel %vm347, %v345, 0.0
        %v365 = vadd.f32 %v363, %v364
        %v366 = vsel %vm347, %v346, 0.0
        %v367 = vadd.f32 %v365, %v366
        %v368 = vrot.slane %v367, 4
        %v369 = vadd.f32 %v367, %v368
        %v370 = vrot.slane %v369, 2
        %v371 = vadd.f32 %v369, %v370
        %v372 = vrot.slane %v371, 1
        %v373 = vadd.f32 %v371, %v372
        %v374 = vld [vmem:[%s2] sm:$0x1]
        %v375 = vadd.f32 %v360, %v374
        %v376 = vadd.f32 %v373, %v374
        %v377 = vmax.f32 %v375, 0.0
        %v378 = vmax.f32 %v376, 0.0
        %v379 = vld [vmem:[%s3] sm:$0xff]
        %v380 = vld [vmem:[%s3 + $0x8] sm:$0xff]
        %v381 = vld [vmem:[%s3 + $0x10] sm:$0xff]
        %v382 = vld [vmem:[%s3 + $0x18] sm:$0xff]
        %v383 = vlaneseq
        %v384 = vshrl.u32 %v383, 7
        %v385 = vsub.s32 0, %v384
        %v386 = vrot.slane %v377, %v385
        %v387 = vlaneseq
        %v388 = vshrl.u32 %v387, 7
        %v389 = vsub.s32 0, %v388
        %v390 = vrot.slane %v378, %v389
        %v391 = vmul.f32 %v386, %v379
        %v392 = vmul.f32 %v386, %v380
        %v393 = vmul.f32 %v386, %v381
        %v394 = vmul.f32 %v386, %v382
        %v395 = vmul.f32 %v390, %v379
        %v396 = vmul.f32 %v390, %v380
        %v397 = vmul.f32 %v390, %v381
        %v398 = vmul.f32 %v390, %v382
        %v399 = vsel %vm347, %v391, 0.0
        %400 = vadd.xlane.f32.xlu0 %v399
        %v401 = vpop.xlane.xlu0 %400
        %v402 = vsel %vm347, %v392, 0.0
        %403 = vadd.xlane.f32.xlu0 %v402
        %v404 = vpop.xlane.xlu0 %403
        %v405 = vsel %vm347, %v393, 0.0
        %406 = vadd.xlane.f32.xlu0 %v405
        %v407 = vpop.xlane.xlu0 %406
        %v408 = vsel %vm347, %v394, 0.0
        %409 = vadd.xlane.f32.xlu0 %v408
        %v410 = vpop.xlane.xlu0 %409
        %v411 = vsel %vm347, %v395, 0.0
        %412 = vadd.xlane.f32.xlu0 %v411
        %v413 = vpop.xlane.xlu0 %412
        %v414 = vsel %vm347, %v396, 0.0
        %415 = vadd.xlane.f32.xlu0 %v414
        %v416 = vpop.xlane.xlu0 %415
        %v417 = vsel %vm347, %v397, 0.0
        %418 = vadd.xlane.f32.xlu0 %v417
        %v419 = vpop.xlane.xlu0 %418
        %v420 = vsel %vm347, %v398, 0.0
        %421 = vadd.xlane.f32.xlu0 %v420
        %v422 = vpop.xlane.xlu0 %421
        %v423 = vld [vmem:[%s4] sm:$0xff]
        %v424 = vld [vmem:[%s4 + $0x8] sm:$0xff]
        %v425 = vld [vmem:[%s4 + $0x10] sm:$0xff]
        %v426 = vld [vmem:[%s4 + $0x18] sm:$0xff]
        %v427 = vadd.f32 %v401, %v423
        %v428 = vadd.f32 %v404, %v424
        %v429 = vadd.f32 %v407, %v425
        %v430 = vadd.f32 %v410, %v426
        %v431 = vadd.f32 %v413, %v423
        %v432 = vadd.f32 %v416, %v424
        %v433 = vadd.f32 %v419, %v425
        %v434 = vadd.f32 %v422, %v426
        %v435 = vsub.f32 0.0, %v427
        %v436 = vsub.f32 0.0, %v428
        %v437 = vsub.f32 0.0, %v429
        %v438 = vsub.f32 0.0, %v430
        %v439 = vsub.f32 0.0, %v431
        %v440 = vsub.f32 0.0, %v432
        %v441 = vsub.f32 0.0, %v433
        %v442 = vsub.f32 0.0, %v434
        %v443 = vmul.f32 %v435, 1.442695
        %v444 = vpow.pop %v443
        %v445 = vmul.f32 %v436, 1.442695
        %v446 = vpow.pop %v445
        %v447 = vmul.f32 %v437, 1.442695
        %v448 = vpow.pop %v447
        %v449 = vmul.f32 %v438, 1.442695
        %v450 = vpow.pop %v449
        %v451 = vmul.f32 %v439, 1.442695
        %v452 = vpow.pop %v451
        %v453 = vmul.f32 %v440, 1.442695
        %v454 = vpow.pop %v453
        %v455 = vmul.f32 %v441, 1.442695
        %v456 = vpow.pop %v455
        %v457 = vmul.f32 %v442, 1.442695
        %v458 = vpow.pop %v457
        %v459 = vadd.f32 %v444, 1.0
        %v460 = vadd.f32 %v446, 1.0
        %v461 = vadd.f32 %v448, 1.0
        %v462 = vadd.f32 %v450, 1.0
        %v463 = vadd.f32 %v452, 1.0
        %v464 = vadd.f32 %v454, 1.0
        %v465 = vadd.f32 %v456, 1.0
        %v466 = vadd.f32 %v458, 1.0
        %v467 = vrcp.pop %v459
        %v468 = vrcp.pop %v460
        %v469 = vrcp.pop %v461
        %v470 = vrcp.pop %v462
        %v471 = vrcp.pop %v463
        %v472 = vrcp.pop %v464
        %v473 = vrcp.pop %v465
        %v474 = vrcp.pop %v466
        %v475 = vadd.f32 %v287, %v289
        %v476 = vadd.f32 %v475, %v291
        %v477 = vadd.f32 %v476, %v293
        %v478 = vrot.slane %v477, 4
        %v479 = vadd.f32 %v477, %v478
        %v480 = vrot.slane %v479, 2
        %v481 = vadd.f32 %v479, %v480
        %v482 = vrot.slane %v481, 1
        %v483 = vadd.f32 %v481, %v482
        %v484 = vadd.f32 %v288, %v290
        %v485 = vadd.f32 %v484, %v292
        %v486 = vadd.f32 %v485, %v294
        %v487 = vrot.slane %v486, 4
        %v488 = vadd.f32 %v486, %v487
        %v489 = vrot.slane %v488, 2
        %v490 = vadd.f32 %v488, %v489
        %v491 = vrot.slane %v490, 1
        %v492 = vadd.f32 %v490, %v491
        %v493 = vadd.f32 %v295, %v297
        %v494 = vadd.f32 %v493, %v299
        %v495 = vadd.f32 %v494, %v301
        %v496 = vrot.slane %v495, 4
        %v497 = vadd.f32 %v495, %v496
        %v498 = vrot.slane %v497, 2
        %v499 = vadd.f32 %v497, %v498
        %v500 = vrot.slane %v499, 1
        %v501 = vadd.f32 %v499, %v500
        %v502 = vadd.f32 %v296, %v298
        %v503 = vadd.f32 %v502, %v300
        %v504 = vadd.f32 %v503, %v302
        %v505 = vrot.slane %v504, 4
        %v506 = vadd.f32 %v504, %v505
        %v507 = vrot.slane %v506, 2
        %v508 = vadd.f32 %v506, %v507
        %v509 = vrot.slane %v508, 1
        %v510 = vadd.f32 %v508, %v509
        %v511 = vmul.f32 %v483, 0.03125
        %v512 = vmul.f32 %v492, 0.03125
        %v513 = vmul.f32 %v501, 0.03125
        %v514 = vmul.f32 %v510, 0.03125
        %v515 = vmax.f32 %v287, %v289
        %v516 = vmax.f32 %v515, %v291
        %v517 = vmax.f32 %v516, %v293
        %v518 = vrot.slane %v517, 4
        %v519 = vmax.f32 %v517, %v518
        %v520 = vrot.slane %v519, 2
        %v521 = vmax.f32 %v519, %v520
        %v522 = vrot.slane %v521, 1
        %v523 = vmax.f32 %v521, %v522
        %v524 = vmax.f32 %v288, %v290
        %v525 = vmax.f32 %v524, %v292
        %v526 = vmax.f32 %v525, %v294
        %v527 = vrot.slane %v526, 4
        %v528 = vmax.f32 %v526, %v527
        %v529 = vrot.slane %v528, 2
        %v530 = vmax.f32 %v528, %v529
        %v531 = vrot.slane %v530, 1
        %v532 = vmax.f32 %v530, %v531
        %v533 = vmax.f32 %v295, %v297
        %v534 = vmax.f32 %v533, %v299
        %v535 = vmax.f32 %v534, %v301
        %v536 = vrot.slane %v535, 4
        %v537 = vmax.f32 %v535, %v536
        %v538 = vrot.slane %v537, 2
        %v539 = vmax.f32 %v537, %v538
        %v540 = vrot.slane %v539, 1
        %v541 = vmax.f32 %v539, %v540
        %v542 = vmax.f32 %v296, %v298
        %v543 = vmax.f32 %v542, %v300
        %v544 = vmax.f32 %v543, %v302
        %v545 = vrot.slane %v544, 4
        %v546 = vmax.f32 %v544, %v545
        %v547 = vrot.slane %v546, 2
        %v548 = vmax.f32 %v546, %v547
        %v549 = vrot.slane %v548, 1
        %v550 = vmax.f32 %v548, %v549
        %s551 = sld [smem:[#allocation6]]
        %v552 = vstv %s551
        %v553 = vmul.f32 %v511, %v552
        %v554 = vmul.f32 %v512, %v552
        %v555 = vmul.f32 %v513, %v552
        %v556 = vmul.f32 %v514, %v552
        %s557 = sld [smem:[#allocation6 + $0x1]]
        %v558 = vstv %s557
        %v559 = vmul.f32 %v523, %v558
        %v560 = vmul.f32 %v532, %v558
        %v561 = vmul.f32 %v541, %v558
        %v562 = vmul.f32 %v550, %v558
        %v563 = vadd.f32 %v553, %v559
        %v564 = vadd.f32 %v554, %v560
        %v565 = vadd.f32 %v555, %v561
        %v566 = vadd.f32 %v556, %v562
        %v567 = vsub.f32 0.0, %v563
        %v568 = vsub.f32 0.0, %v564
        %v569 = vsub.f32 0.0, %v565
        %v570 = vsub.f32 0.0, %v566
        %v571 = vmul.f32 %v567, 1.442695
        %v572 = vpow.pop %v571
        %v573 = vmul.f32 %v568, 1.442695
        %v574 = vpow.pop %v573
        %v575 = vmul.f32 %v569, 1.442695
        %v576 = vpow.pop %v575
        %v577 = vmul.f32 %v570, 1.442695
        %v578 = vpow.pop %v577
        %v579 = vadd.f32 %v572, 1.0
        %v580 = vadd.f32 %v574, 1.0
        %v581 = vadd.f32 %v576, 1.0
        %v582 = vadd.f32 %v578, 1.0
        %v583 = vrcp.pop %v579
        %v584 = vrcp.pop %v580
        %v585 = vrcp.pop %v581
        %v586 = vrcp.pop %v582
        %588 = vset.pattern.permute.xlu0 0
        %589 = vperm.xlu0 %588, %v467
        %v590 = vpop.permute.xlu0 %589
        %593 = vset.pattern.permute.xlu0 0
        %594 = vperm.xlu0 %593, %v468
        %v595 = vpop.permute.xlu0 %594
        %598 = vset.pattern.permute.xlu0 0
        %599 = vperm.xlu0 %598, %v469
        %v600 = vpop.permute.xlu0 %599
        %603 = vset.pattern.permute.xlu0 0
        %604 = vperm.xlu0 %603, %v470
        %v605 = vpop.permute.xlu0 %604
        %608 = vset.pattern.permute.xlu0 0
        %609 = vperm.xlu0 %608, %v471
        %v610 = vpop.permute.xlu0 %609
        %613 = vset.pattern.permute.xlu0 0
        %614 = vperm.xlu0 %613, %v472
        %v615 = vpop.permute.xlu0 %614
        %618 = vset.pattern.permute.xlu0 0
        %619 = vperm.xlu0 %618, %v473
        %v620 = vpop.permute.xlu0 %619
        %623 = vset.pattern.permute.xlu0 0
        %624 = vperm.xlu0 %623, %v474
        %v625 = vpop.permute.xlu0 %624
        %v627 = vmul.f32 %v287, %v590
        %v628 = vmul.f32 %v288, %v590
        %v629 = vmul.f32 %v289, %v595
        %v630 = vmul.f32 %v290, %v595
        %v631 = vmul.f32 %v291, %v600
        %v632 = vmul.f32 %v292, %v600
        %v633 = vmul.f32 %v293, %v605
        %v634 = vmul.f32 %v294, %v605
        %v635 = vmul.f32 %v295, %v610
        %v636 = vmul.f32 %v296, %v610
        %v637 = vmul.f32 %v297, %v615
        %v638 = vmul.f32 %v298, %v615
        %v639 = vmul.f32 %v299, %v620
        %v640 = vmul.f32 %v300, %v620
        %v641 = vmul.f32 %v301, %v625
        %v642 = vmul.f32 %v302, %v625
        %v643 = vmul.f32 %v627, %v583
        %v644 = vmul.f32 %v628, %v584
        %v645 = vmul.f32 %v629, %v583
        %v646 = vmul.f32 %v630, %v584
        %v647 = vmul.f32 %v631, %v583
        %v648 = vmul.f32 %v632, %v584
        %v649 = vmul.f32 %v633, %v583
        %v650 = vmul.f32 %v634, %v584
        %v651 = vmul.f32 %v635, %v585
        %v652 = vmul.f32 %v636, %v586
        %v653 = vmul.f32 %v637, %v585
        %v654 = vmul.f32 %v638, %v586
        %v655 = vmul.f32 %v639, %v585
        %v656 = vmul.f32 %v640, %v586
        %v657 = vmul.f32 %v641, %v585
        %v658 = vmul.f32 %v642, %v586
        %659 = vst [vmem:[%s284] sm:$0xff] %v643
        %660 = vst [vmem:[%s284 + $0x8] sm:$0xff] %v644
        %661 = vst [vmem:[%s284 + $0x10] sm:$0xff] %v645
        %662 = vst [vmem:[%s284 + $0x18] sm:$0xff] %v646
        %663 = vst [vmem:[%s284 + $0x20] sm:$0xff] %v647
        %664 = vst [vmem:[%s284 + $0x28] sm:$0xff] %v648
        %665 = vst [vmem:[%s284 + $0x30] sm:$0xff] %v649
        %666 = vst [vmem:[%s284 + $0x38] sm:$0xff] %v650
        %667 = vst [vmem:[%s284 + $0x40] sm:$0xff] %v651
        %668 = vst [vmem:[%s284 + $0x48] sm:$0xff] %v652
        %669 = vst [vmem:[%s284 + $0x50] sm:$0xff] %v653
        %670 = vst [vmem:[%s284 + $0x58] sm:$0xff] %v654
        %671 = vst [vmem:[%s284 + $0x60] sm:$0xff] %v655
        %672 = vst [vmem:[%s284 + $0x68] sm:$0xff] %v656
        %673 = vst [vmem:[%s284 + $0x70] sm:$0xff] %v657
        %674 = vst [vmem:[%s284 + $0x78] sm:$0xff] %v658
        %s675 = sand.u32 %s163, 1
        %s676 = scalar_lea.sflag [#allocation4], %s675
        %s677 = sand.u32 %s163, 1
        %s678 = smul.addr %s677, 128
        %s679 = scalar_lea.vmem [#allocation7], %s678
        // Predicated region
        $region53: #{tpu_custom_call.1} parent=43 // pred_check
          %p680 = pneg %p173
        $region54: #{tpu_custom_call.1} parent=43 // pred_check_branch
          %682 = sbr.rel (%p680) target = $region56
        $region55: #{tpu_custom_call.1} parent=43 // pred_region
          %s683 = smul.u32 2, %s24
          %s685 = ssub.s32 2048, 2048
          %686 = vsyncadd %s676, %s685
          %s687 = smul.addr %s683, 8
          %s688 = smul.addr %s687, 128
          %s689 = scalar_lea.hbm %s6, %s688
          %s690 = sshll.u32 %s679, 4
          %s691 = int_to_ptr.vmem [resolvable:$true] %s690
          %696 = dma.vmem_to_hbm [thread:$0]  %s691, 2048, %s689, %s676, 256, 256, 16
        $region56: #{tpu_custom_call.1} parent=43 // pred_fallthru
          _
      $region44: #{tpu_custom_call.1} parent=5 // pred_fallthru
        _
      %p697 = scmp.le.s32.totalorder 2, %s19
      // Predicated region
      $region57: #{tpu_custom_call.1} parent=5 // pred_check
        %p698 = pneg %p697
      $region58: #{tpu_custom_call.1} parent=5 // pred_check_branch
        %700 = sbr.rel (%p698) target = $region60
      $region59: #{tpu_custom_call.1} parent=5 // pred_region
        %s701 = ssub.s32 %s19, 2
        // Predicated region
        $region61: #{tpu_custom_call.1} parent=59 // pred_check
          %p702 = pneg %p179
        $region62: #{tpu_custom_call.1} parent=59 // pred_check_branch
          %704 = sbr.rel (%p702) target = $region64
        $region63: #{tpu_custom_call.1} parent=59 // pred_region
          %s705 = sand.u32 %s164, 1
          %s706 = scalar_lea.sflag [#allocation4], %s705
          %s707 = sand.u32 %s164, 1
          %s708 = smul.addr %s707, 128
          %s709 = scalar_lea.vmem [#allocation7], %s708
          %710 = dma.done %s706, 2048
        $region64: #{tpu_custom_call.1} parent=59 // pred_fallthru
          _
      $region60: #{tpu_custom_call.1} parent=5 // pred_fallthru
        _
    $region6: #{tpu_custom_call.1} parent=1 // loop_footer
      %s23 = sadd.s32 1, %s19
    $region7: #{tpu_custom_call.1} parent=1 // loop_footer_branch
      %18 = sbr.rel target = $region3
    $region8: #{tpu_custom_call.1} parent=1 // loop_exit
      _
    %711 = vsyncpa [#allocation3], 1
    %s712 = scalar_lea.sflag [#allocation3], 1
    %713 = vsyncpa %s712, 1
    %714 = vsyncpa [#allocation4], 1
    %s715 = scalar_lea.sflag [#allocation4], 1
    %716 = vsyncpa %s715, 1
    %717 = vsyncpa [#allocation5], 1
    %s718 = scalar_lea.sflag [#allocation5], 1
    %719 = vsyncpa %s718, 1

</llo_original>
